<compile_context>
chip_gen: v7x
topology: tpu7x:2x2x1
jax: 0.10.0
libtpu: 0.0.40
codegen_flags: <defaults>
</compile_context>

<pallas_src>
import functools
import math

import jax
import jax.numpy as jnp
from jax.experimental import pallas as pl
from jax.experimental.pallas import tpu as pltpu

LANE = 128  # TPU lane width; hidden / act feature dims are padded to this.


def mlp_gaussian_kernel(obs_ref, noise_ref, w1_ref, w2_ref, w3_ref,
                        bias_ref, std_ref, act_ref):
    """mu = mlp(obs);  act = mu + std * z   (z ~ N(0,1) supplied as input)."""
    # Weights are stored [in, out] (transposed vs torch), so y = x @ W + b.
    h = jnp.dot(obs_ref[...], w1_ref[...], preferred_element_type=jnp.float32)
    h = jnp.maximum(h + bias_ref[0:1, :], 0.0)
    h = jnp.dot(h, w2_ref[...], preferred_element_type=jnp.float32)
    h = jnp.maximum(h + bias_ref[1:2, :], 0.0)
    mu = jnp.dot(h, w3_ref[...], preferred_element_type=jnp.float32) + bias_ref[2:3, :]
    # std_ref is (1, LANE) -> broadcasts over the batch; padded lanes are 0.
    act_ref[...] = mu + std_ref[...] * noise_ref[...]


def init_params(key, obs_dim, act_dim, hidden_sizes):
    """torch.nn.Linear default init: U(-1/sqrt(fan_in), 1/sqrt(fan_in)) for
    weight and bias; weights stored transposed as [in, out].
    log_std = ones(act_dim) * -0.5  (as in MLPGaussian.__init__)."""
    sizes = [obs_dim] + list(hidden_sizes) + [act_dim]
    ws, bs = [], []
    for i in range(len(sizes) - 1):
        fan_in, fan_out = sizes[i], sizes[i + 1]
        bound = 1.0 / math.sqrt(fan_in)
        key, kw, kb = jax.random.split(key, 3)
        ws.append(jax.random.uniform(kw, (fan_in, fan_out), jnp.float32,
                                     minval=-bound, maxval=bound))
        bs.append(jax.random.uniform(kb, (fan_out,), jnp.float32,
                                     minval=-bound, maxval=bound))
    log_std = jnp.full((act_dim,), -0.5, jnp.float32)
    return ws, bs, log_std


def pad_params(ws, bs, log_std):
    """Zero-pad parameters to lane-dense shapes once, at init time.
    w1 keeps its real (unpadded) input dim so obs can be passed as (B, obs_dim);
    std = exp(log_std) is precomputed here (padded lanes exactly 0)."""
    w1 = jnp.pad(ws[0], ((0, 0), (0, LANE - ws[0].shape[1])))                 # (obs_dim, 128)
    w2 = jnp.pad(ws[1], ((0, LANE - ws[1].shape[0]), (0, LANE - ws[1].shape[1])))
    w3 = jnp.pad(ws[2], ((0, LANE - ws[2].shape[0]), (0, LANE - ws[2].shape[1])))
    bias_stack = jnp.stack([jnp.pad(b, (0, LANE - b.shape[0])) for b in bs])  # (3, 128)
    std_pad = jnp.pad(jnp.exp(log_std), (0, LANE - log_std.shape[0]))[None, :]  # (1, 128)
    return (w1, w2, w3), bias_stack, std_pad


@functools.partial(jax.jit, static_argnames=("act_dim",))
def mlp_gaussian_forward(key, obs, w1, w2, w3, bias_stack, std_pad, *, act_dim):
    """Equivalent of MLPGaussian.forward on a batch of observations:
    returns the sampled action, [B, act_dim]. One dispatch per call."""
    B = obs.shape[0]
    noise = jax.random.normal(key, (B, LANE), jnp.float32)
    act_p = pl.pallas_call(
        mlp_gaussian_kernel,
        out_shape=jax.ShapeDtypeStruct((B, LANE), jnp.float32),  # action (padded)
        in_specs=[
            pl.BlockSpec(memory_space=pltpu.MemorySpace.VMEM),   # obs (B, obs_dim)
            pl.BlockSpec(memory_space=pltpu.MemorySpace.VMEM),   # noise (B, 128)
            pl.BlockSpec(memory_space=pltpu.MemorySpace.VMEM),   # w1
            pl.BlockSpec(memory_space=pltpu.MemorySpace.VMEM),   # w2
            pl.BlockSpec(memory_space=pltpu.MemorySpace.VMEM),   # w3
            pl.BlockSpec(memory_space=pltpu.MemorySpace.VMEM),   # packed biases (3, 128)
            pl.BlockSpec(memory_space=pltpu.MemorySpace.VMEM),   # std (1, 128)
        ],
        out_specs=pl.BlockSpec(memory_space=pltpu.MemorySpace.VMEM),
    )(obs, noise, w1, w2, w3, bias_stack, std_pad)
    return act_p[:, :act_dim]


if __name__ == "__main__":
    obs_dim, act_dim = 16, 8
    hidden_sizes = [32, 32]
    B = 128  # batch many env observations per call (scale to 1K-8K for throughput)

    root = jax.random.PRNGKey(0)
    k_params, k_obs, k_noise = jax.random.split(root, 3)

    ws, bs, log_std = init_params(k_params, obs_dim, act_dim, hidden_sizes)
    (w1, w2, w3), bias_stack, std_pad = pad_params(ws, bs, log_std)

    obs = jax.random.normal(k_obs, (B, obs_dim), jnp.float32)

    # NOTE: the caller must supply a fresh PRNG key every step (here k_noise),
    # otherwise successive calls draw identical noise.
    action = mlp_gaussian_forward(k_noise, obs, w1, w2, w3, bias_stack, std_pad,
                                  act_dim=act_dim)
    action = jax.block_until_ready(action)

    # --- reference check (plain JAX, unpadded params, same noise) ---
    h = jnp.maximum(obs @ ws[0] + bs[0], 0.0)
    h = jnp.maximum(h @ ws[1] + bs[1], 0.0)
    mu_ref = h @ ws[2] + bs[2]
    noise_ref = jax.random.normal(k_noise, (B, LANE), jnp.float32)[:, :act_dim]
    act_ref = mu_ref + jnp.exp(log_std) * noise_ref

    assert action.shape == (B, act_dim)
    assert jnp.allclose(action, act_ref, atol=1e-4, rtol=1e-4), \
        float(jnp.max(jnp.abs(action - act_ref)))

    # Sampling sanity: z = (action - mu) / std should look like N(0, 1).
    z = (action - mu_ref) / jnp.exp(log_std)
    assert bool(jnp.all(jnp.isfinite(z)))
    assert abs(float(z.mean())) < 0.2            # 1024 samples -> ~6 sigma bound
    assert 0.8 < float(z.std()) < 1.2

    print("KERNEL_OK")
</pallas_src>

<mosaic_0001>
module attributes {stable_mosaic.version = 11 : i64} {
  func.func @mlp_gaussian_kernel(%arg0: memref<128x16xf32, #tpu.memory_space<vmem>>, %arg1: memref<128x128xf32, #tpu.memory_space<vmem>>, %arg2: memref<16x128xf32, #tpu.memory_space<vmem>>, %arg3: memref<128x128xf32, #tpu.memory_space<vmem>>, %arg4: memref<128x128xf32, #tpu.memory_space<vmem>>, %arg5: memref<3x128xf32, #tpu.memory_space<vmem>>, %arg6: memref<1x128xf32, #tpu.memory_space<vmem>>, %arg7: memref<128x128xf32, #tpu.memory_space<vmem>>) attributes {dimension_semantics = [], scalar_prefetch = 0 : i64, scratch_operands = 0 : i64, tpu.core_type = #tpu.core_type<tc>} {
    %c0 = arith.constant 0 : index
    %c0_0 = arith.constant 0 : index
    %0 = vector.load %arg0[%c0, %c0_0] : memref<128x16xf32, #tpu.memory_space<vmem>>, vector<128x16xf32>
    %c0_1 = arith.constant 0 : index
    %c0_2 = arith.constant 0 : index
    %1 = vector.load %arg2[%c0_1, %c0_2] : memref<16x128xf32, #tpu.memory_space<vmem>>, vector<16x128xf32>
    %cst = arith.constant dense<0.000000e+00> : vector<128x128xf32>
    %2 = tpu.matmul %0, %1, %cst {dimension_numbers = #tpu.dot_dimension_numbers<[1], [0], [0], [1], [0, 0, 1, 1], [], []>} : vector<128x16xf32>, vector<16x128xf32>, vector<128x128xf32> -> vector<128x128xf32>
    %c0_3 = arith.constant 0 : index
    %c0_4 = arith.constant 0 : index
    %3 = vector.load %arg5[%c0_3, %c0_4] : memref<3x128xf32, #tpu.memory_space<vmem>>, vector<1x128xf32>
    %4 = vector.broadcast %3 : vector<1x128xf32> to vector<128x128xf32>
    %5 = arith.addf %2, %4 : vector<128x128xf32>
    %cst_5 = arith.constant 0.000000e+00 : f32
    %6 = vector.broadcast %cst_5 : f32 to vector<128x128xf32>
    %7 = arith.maximumf %5, %6 : vector<128x128xf32>
    %c0_6 = arith.constant 0 : index
    %c0_7 = arith.constant 0 : index
    %8 = vector.load %arg3[%c0_6, %c0_7] : memref<128x128xf32, #tpu.memory_space<vmem>>, vector<128x128xf32>
    %cst_8 = arith.constant dense<0.000000e+00> : vector<128x128xf32>
    %9 = tpu.matmul %7, %8, %cst_8 {dimension_numbers = #tpu.dot_dimension_numbers<[1], [0], [0], [1], [0, 0, 1, 1], [], []>} : vector<128x128xf32>, vector<128x128xf32>, vector<128x128xf32> -> vector<128x128xf32>
    %c1 = arith.constant 1 : index
    %c0_9 = arith.constant 0 : index
    %10 = vector.load %arg5[%c1, %c0_9] : memref<3x128xf32, #tpu.memory_space<vmem>>, vector<1x128xf32>
    %11 = vector.broadcast %10 : vector<1x128xf32> to vector<128x128xf32>
    %12 = arith.addf %9, %11 : vector<128x128xf32>
    %cst_10 = arith.constant 0.000000e+00 : f32
    %13 = vector.broadcast %cst_10 : f32 to vector<128x128xf32>
    %14 = arith.maximumf %12, %13 : vector<128x128xf32>
    %c0_11 = arith.constant 0 : index
    %c0_12 = arith.constant 0 : index
    %15 = vector.load %arg4[%c0_11, %c0_12] : memref<128x128xf32, #tpu.memory_space<vmem>>, vector<128x128xf32>
    %cst_13 = arith.constant dense<0.000000e+00> : vector<128x128xf32>
    %16 = tpu.matmul %14, %15, %cst_13 {dimension_numbers = #tpu.dot_dimension_numbers<[1], [0], [0], [1], [0, 0, 1, 1], [], []>} : vector<128x128xf32>, vector<128x128xf32>, vector<128x128xf32> -> vector<128x128xf32>
    %c2 = arith.constant 2 : index
    %c0_14 = arith.constant 0 : index
    %17 = vector.load %arg5[%c2, %c0_14] : memref<3x128xf32, #tpu.memory_space<vmem>>, vector<1x128xf32>
    %18 = vector.broadcast %17 : vector<1x128xf32> to vector<128x128xf32>
    %19 = arith.addf %16, %18 : vector<128x128xf32>
    %c0_15 = arith.constant 0 : index
    %c0_16 = arith.constant 0 : index
    %20 = vector.load %arg6[%c0_15, %c0_16] : memref<1x128xf32, #tpu.memory_space<vmem>>, vector<1x128xf32>
    %c0_17 = arith.constant 0 : index
    %c0_18 = arith.constant 0 : index
    %21 = vector.load %arg1[%c0_17, %c0_18] : memref<128x128xf32, #tpu.memory_space<vmem>>, vector<128x128xf32>
    %22 = vector.broadcast %20 : vector<1x128xf32> to vector<128x128xf32>
    %23 = arith.mulf %22, %21 : vector<128x128xf32>
    %24 = arith.addf %19, %23 : vector<128x128xf32>
    %c0_19 = arith.constant 0 : index
    %c0_20 = arith.constant 0 : index
    %25 = vector.load %arg7[%c0_19, %c0_20] : memref<128x128xf32, #tpu.memory_space<vmem>>, vector<128x128xf32>
    tpu.vector_store %arg7[%c0_19, %c0_20], %24 {strides = array<i32>} : memref<128x128xf32, #tpu.memory_space<vmem>>, vector<128x128xf32>,
    return
  }
}

</mosaic_0001>

<llo_original>
// kernel: mlp_gaussian_forward.1
$region0: #{mlp_gaussian_forward.1}
  #allocation0 [shape = 'u32[]', space=smem, size = 0x4, offset = 0x4, fixed_abs, tag = 'smem constant byte address 0x4 - core index']
  #allocation1 [shape = 'u32[144,128]{1,0:T(1,128)}', space=vmem, size = 0x12000, scoped, tag = 'internal scratch']
  %s0 = inlined_call_operand.vmem [shape: f32[128,16], index: 0, kind: input, shape index: {}]
  %s1 = inlined_call_operand.vmem [shape: f32[128,128], index: 1, kind: input, shape index: {}]
  %s2 = inlined_call_operand.vmem [shape: f32[16,128], index: 2, kind: input, shape index: {}]
  %s3 = inlined_call_operand.vmem [shape: f32[128,128], index: 3, kind: input, shape index: {}]
  %s4 = inlined_call_operand.vmem [shape: f32[128,128], index: 4, kind: input, shape index: {}]
  %s5 = inlined_call_operand.vmem [shape: f32[3,128], index: 5, kind: input, shape index: {}]
  %s6 = inlined_call_operand.vmem [shape: f32[1,128], index: 6, kind: input, shape index: {}]
  %s7 = inlined_call_operand.vmem [shape: f32[128,128], index: 7, kind: output, shape index: {}]
  %s8 = sld [smem:[#allocation0]]
  $region38: #{mlp_gaussian_forward.1} parent=0
    _
  %s10 = ssub.s32 1, %s8
  %s11 = scalar_select 0, %s10, %s8
  // Predicated region
  $region2: #{mlp_gaussian_forward.1} parent=0 // pred_check
    _
  $region3: #{mlp_gaussian_forward.1} parent=0 // pred_check_branch
    %13 = sbr.rel (0) target = $region5
  $region4: #{mlp_gaussian_forward.1} parent=0 // pred_region
    _
  $region5: #{mlp_gaussian_forward.1} parent=0 // pred_fallthru
    _
  // Predicated region
  $region6: #{mlp_gaussian_forward.1} parent=0 // pred_check
    _
  $region7: #{mlp_gaussian_forward.1} parent=0 // pred_check_branch
    %15 = sbr.rel (0) target = $region9
  $region8: #{mlp_gaussian_forward.1} parent=0 // pred_region
    _
  $region9: #{mlp_gaussian_forward.1} parent=0 // pred_fallthru
    _
  // Predicated region
  $region10: #{mlp_gaussian_forward.1} parent=0 // pred_check
    _
  $region11: #{mlp_gaussian_forward.1} parent=0 // pred_check_branch
    %17 = sbr.rel (0) target = $region13
  $region12: #{mlp_gaussian_forward.1} parent=0 // pred_region
    _
  $region13: #{mlp_gaussian_forward.1} parent=0 // pred_fallthru
    _
  // Predicated region
  $region14: #{mlp_gaussian_forward.1} parent=0 // pred_check
    _
  $region15: #{mlp_gaussian_forward.1} parent=0 // pred_check_branch
    %19 = sbr.rel (0) target = $region17
  $region16: #{mlp_gaussian_forward.1} parent=0 // pred_region
    _
  $region17: #{mlp_gaussian_forward.1} parent=0 // pred_fallthru
    _
  // Predicated region
  $region18: #{mlp_gaussian_forward.1} parent=0 // pred_check
    _
  $region19: #{mlp_gaussian_forward.1} parent=0 // pred_check_branch
    %21 = sbr.rel (0) target = $region21
  $region20: #{mlp_gaussian_forward.1} parent=0 // pred_region
    _
  $region21: #{mlp_gaussian_forward.1} parent=0 // pred_fallthru
    _
  // Predicated region
  $region22: #{mlp_gaussian_forward.1} parent=0 // pred_check
    _
  $region23: #{mlp_gaussian_forward.1} parent=0 // pred_check_branch
    %23 = sbr.rel (0) target = $region25
  $region24: #{mlp_gaussian_forward.1} parent=0 // pred_region
    _
  $region25: #{mlp_gaussian_forward.1} parent=0 // pred_fallthru
    _
  // Predicated region
  $region26: #{mlp_gaussian_forward.1} parent=0 // pred_check
    _
  $region27: #{mlp_gaussian_forward.1} parent=0 // pred_check_branch
    %25 = sbr.rel (0) target = $region29
  $region28: #{mlp_gaussian_forward.1} parent=0 // pred_region
    _
  $region29: #{mlp_gaussian_forward.1} parent=0 // pred_fallthru
    _
  %v26 = vld [vmem:[%s0] sm:$0xff]
  %v27 = vld [vmem:[%s0 + $0x8] sm:$0xff]
  %v28 = vld [vmem:[%s0 + $0x10] sm:$0xff]
  %v29 = vld [vmem:[%s0 + $0x18] sm:$0xff]
  %v30 = vld [vmem:[%s0 + $0x20] sm:$0xff]
  %v31 = vld [vmem:[%s0 + $0x28] sm:$0xff]
  %v32 = vld [vmem:[%s0 + $0x30] sm:$0xff]
  %v33 = vld [vmem:[%s0 + $0x38] sm:$0xff]
  %v34 = vld [vmem:[%s0 + $0x40] sm:$0xff]
  %v35 = vld [vmem:[%s0 + $0x48] sm:$0xff]
  %v36 = vld [vmem:[%s0 + $0x50] sm:$0xff]
  %v37 = vld [vmem:[%s0 + $0x58] sm:$0xff]
  %v38 = vld [vmem:[%s0 + $0x60] sm:$0xff]
  %v39 = vld [vmem:[%s0 + $0x68] sm:$0xff]
  %v40 = vld [vmem:[%s0 + $0x70] sm:$0xff]
  %v41 = vld [vmem:[%s0 + $0x78] sm:$0xff]
  %v42 = vld [vmem:[%s2] sm:$0xff]
  %v43 = vld [vmem:[%s2 + $0x8] sm:$0xff]
  %v44 = vld [vmem:[%s5] sm:$0x1]
  %v45 = vlaneseq
  %v46 = vshrl.u32 %v45, 7
  %v47 = vsub.s32 0, %v46
  %v48 = vrot.slane %v44, %v47
  %vm49 = vcmask 130048
  %v51 = vsel %vm49, %v26, 0
  %v54 = vsel %vm49, %v27, 0
  %v57 = vsel %vm49, %v28, 0
  %v60 = vsel %vm49, %v29, 0
  %v63 = vsel %vm49, %v30, 0
  %v66 = vsel %vm49, %v31, 0
  %v69 = vsel %vm49, %v32, 0
  %v72 = vsel %vm49, %v33, 0
  %v75 = vsel %vm49, %v34, 0
  %v78 = vsel %vm49, %v35, 0
  %v81 = vsel %vm49, %v36, 0
  %v84 = vsel %vm49, %v37, 0
  %v87 = vsel %vm49, %v38, 0
  %v90 = vsel %vm49, %v39, 0
  %v93 = vsel %vm49, %v40, 0
  %v96 = vsel %vm49, %v41, 0
  %98 = vmatprep.subr.mxu0 0.0
  %99 = vmatpush1.msra.mxu0 %v42
  %100 = vmatprep.subr.mxu0 0.0
  %101 = vmatpush1.msra.mxu0 %v43
  %102 = vmatprep.subr.mxu0 0.0
  %103 = vmatpush1.msra.mxu0 0.0
  %104 = vmatprep.subr.mxu0 0.0
  %105 = vmatpush1.msra.mxu0 0.0
  %106 = vmatprep.subr.mxu0 0.0
  %107 = vmatpush1.msra.mxu0 0.0
  %108 = vmatprep.subr.mxu0 0.0
  %109 = vmatpush1.msra.mxu0 0.0
  %110 = vmatprep.subr.mxu0 0.0
  %111 = vmatpush1.msra.mxu0 0.0
  %112 = vmatprep.subr.mxu0 0.0
  %113 = vmatpush1.msra.mxu0 0.0
  %114 = vmatprep.subr.mxu0 0.0
  %115 = vmatpush1.msra.mxu0 0.0
  %116 = vmatprep.subr.mxu0 0.0
  %117 = vmatpush1.msra.mxu0 0.0
  %118 = vmatprep.subr.mxu0 0.0
  %119 = vmatpush1.msra.mxu0 0.0
  %120 = vmatprep.subr.mxu0 0.0
  %121 = vmatpush1.msra.mxu0 0.0
  %122 = vmatprep.subr.mxu0 0.0
  %123 = vmatpush1.msra.mxu0 0.0
  %124 = vmatprep.subr.mxu0 0.0
  %125 = vmatpush1.msra.mxu0 0.0
  %126 = vmatprep.subr.mxu0 0.0
  %127 = vmatpush1.msra.mxu0 0.0
  %128 = vmatprep.subr.mxu0 0.0
  %129 = vmatpush1.msra.mxu0 0.0
  %130 = vmatprep.subr.mxu0 0.0
  %131 = vmatpush1.msra.mxu0 0.0
  %132 = vmatprep.subr.mxu0 0.0
  %133 = vmatpush1.msra.mxu0 0.0
  %134 = vmatprep.subr.mxu0 0.0
  %135 = vmatpush1.msra.mxu0 0.0
  %136 = vmatprep.subr.mxu0 0.0
  %137 = vmatpush1.msra.mxu0 0.0
  %138 = vmatprep.subr.mxu0 0.0
  %139 = vmatpush1.msra.mxu0 0.0
  %140 = vmatprep.subr.mxu0 0.0
  %141 = vmatpush1.msra.mxu0 0.0
  %142 = vmatprep.subr.mxu0 0.0
  %143 = vmatpush1.msra.mxu0 0.0
  %144 = vmatprep.subr.mxu0 0.0
  %145 = vmatpush1.msra.mxu0 0.0
  %146 = vmatprep.subr.mxu0 0.0
  %147 = vmatpush1.msra.mxu0 0.0
  %148 = vmatprep.subr.mxu0 0.0
  %149 = vmatpush1.msra.mxu0 0.0
  %150 = vmatprep.subr.mxu0 0.0
  %151 = vmatpush1.msra.mxu0 0.0
  %152 = vmatprep.subr.mxu0 0.0
  %153 = vmatpush1.msra.mxu0 0.0
  %154 = vmatprep.subr.mxu0 0.0
  %155 = vmatpush1.msra.mxu0 0.0
  %156 = vmatprep.subr.mxu0 0.0
  %157 = vmatpush1.msra.mxu0 0.0
  %158 = vmatprep.subr.mxu0 0.0
  %159 = vmatpush1.msra.mxu0 0.0
  %160 = vmatprep.subr.mxu0 0.0
  %161 = vmatpush1.msra.mxu0 0.0
  %162 = vmatprep.mubr.f32.mxu0 0.0
  %163 = vmatmul.mubr.f32.gmra.mrb[0].mxu0 %v51
  %v164 = vpop.f32.mrb[0].mxu0
  %v165 = vadd.f32 %v48, %v164
  %v166 = vpop.f32.mrb[0].mxu0
  %167 = vmatprep.mubr.f32.mxu0 0.0
  %168 = vmatmul.mubr.f32.gmra.mrb[0].mxu0 %v54
  %v169 = vpop.f32.mrb[0].mxu0
  %v170 = vadd.f32 %v48, %v169
  %v171 = vpop.f32.mrb[0].mxu0
  %172 = vmatprep.mubr.f32.mxu0 0.0
  %173 = vmatmul.mubr.f32.gmra.mrb[0].mxu0 %v57
  %v174 = vpop.f32.mrb[0].mxu0
  %v175 = vadd.f32 %v48, %v174
  %v176 = vpop.f32.mrb[0].mxu0
  %177 = vmatprep.mubr.f32.mxu0 0.0
  %178 = vmatmul.mubr.f32.gmra.mrb[0].mxu0 %v60
  %v179 = vpop.f32.mrb[0].mxu0
  %v180 = vadd.f32 %v48, %v179
  %v181 = vpop.f32.mrb[0].mxu0
  %182 = vmatprep.mubr.f32.mxu0 0.0
  %183 = vmatmul.mubr.f32.gmra.mrb[0].mxu0 %v63
  %v184 = vpop.f32.mrb[0].mxu0
  %v185 = vadd.f32 %v48, %v184
  %v186 = vpop.f32.mrb[0].mxu0
  %187 = vmatprep.mubr.f32.mxu0 0.0
  %188 = vmatmul.mubr.f32.gmra.mrb[0].mxu0 %v66
  %v189 = vpop.f32.mrb[0].mxu0
  %v190 = vadd.f32 %v48, %v189
  %v191 = vpop.f32.mrb[0].mxu0
  %192 = vmatprep.mubr.f32.mxu0 0.0
  %193 = vmatmul.mubr.f32.gmra.mrb[0].mxu0 %v69
  %v194 = vpop.f32.mrb[0].mxu0
  %v195 = vadd.f32 %v48, %v194
  %v196 = vpop.f32.mrb[0].mxu0
  %197 = vmatprep.mubr.f32.mxu0 0.0
  %198 = vmatmul.mubr.f32.gmra.mrb[0].mxu0 %v72
  %v199 = vpop.f32.mrb[0].mxu0
  %v200 = vadd.f32 %v48, %v199
  %v201 = vpop.f32.mrb[0].mxu0
  %202 = vmatprep.mubr.f32.mxu0 0.0
  %203 = vmatmul.mubr.f32.gmra.mrb[0].mxu0 %v75
  %v204 = vpop.f32.mrb[0].mxu0
  %v205 = vadd.f32 %v48, %v204
  %v206 = vpop.f32.mrb[0].mxu0
  %207 = vmatprep.mubr.f32.mxu0 0.0
  %208 = vmatmul.mubr.f32.gmra.mrb[0].mxu0 %v78
  %v209 = vpop.f32.mrb[0].mxu0
  %v210 = vadd.f32 %v48, %v209
  %v211 = vpop.f32.mrb[0].mxu0
  %212 = vmatprep.mubr.f32.mxu0 0.0
  %213 = vmatmul.mubr.f32.gmra.mrb[0].mxu0 %v81
  %v214 = vpop.f32.mrb[0].mxu0
  %v215 = vadd.f32 %v48, %v214
  %v216 = vpop.f32.mrb[0].mxu0
  %217 = vmatprep.mubr.f32.mxu0 0.0
  %218 = vmatmul.mubr.f32.gmra.mrb[0].mxu0 %v84
  %v219 = vpop.f32.mrb[0].mxu0
  %v220 = vadd.f32 %v48, %v219
  %v221 = vpop.f32.mrb[0].mxu0
  %222 = vmatprep.mubr.f32.mxu0 0.0
  %223 = vmatmul.mubr.f32.gmra.mrb[0].mxu0 %v87
  %v224 = vpop.f32.mrb[0].mxu0
  %v225 = vadd.f32 %v48, %v224
  %v226 = vpop.f32.mrb[0].mxu0
  %227 = vmatprep.mubr.f32.mxu0 0.0
  %228 = vmatmul.mubr.f32.gmra.mrb[0].mxu0 %v90
  %v229 = vpop.f32.mrb[0].mxu0
  %v230 = vadd.f32 %v48, %v229
  %v231 = vpop.f32.mrb[0].mxu0
  %232 = vmatprep.mubr.f32.mxu0 0.0
  %233 = vmatmul.mubr.f32.gmra.mrb[0].mxu0 %v93
  %v234 = vpop.f32.mrb[0].mxu0
  %v235 = vadd.f32 %v48, %v234
  %v236 = vpop.f32.mrb[0].mxu0
  %237 = vmatprep.mubr.f32.mxu0 0.0
  %238 = vmatmul.mubr.f32.gmra.mrb[0].mxu0 %v96
  %v239 = vpop.f32.mrb[0].mxu0
  %v240 = vadd.f32 %v48, %v239
  %v241 = vpop.f32.mrb[0].mxu0
  %242 = vdwg.mxu0
  %v243 = vmax.f32 %v165, 0.0
  %v244 = vmax.f32 %v170, 0.0
  %v245 = vmax.f32 %v175, 0.0
  %v246 = vmax.f32 %v180, 0.0
  %v247 = vmax.f32 %v185, 0.0
  %v248 = vmax.f32 %v190, 0.0
  %v249 = vmax.f32 %v195, 0.0
  %v250 = vmax.f32 %v200, 0.0
  %v251 = vmax.f32 %v205, 0.0
  %v252 = vmax.f32 %v210, 0.0
  %v253 = vmax.f32 %v215, 0.0
  %v254 = vmax.f32 %v220, 0.0
  %v255 = vmax.f32 %v225, 0.0
  %v256 = vmax.f32 %v230, 0.0
  %v257 = vmax.f32 %v235, 0.0
  %v258 = vmax.f32 %v240, 0.0
  %v259 = vld [vmem:[%s3] sm:$0xff]
  %v260 = vld [vmem:[%s3 + $0x8] sm:$0xff]
  %v261 = vld [vmem:[%s3 + $0x10] sm:$0xff]
  %v262 = vld [vmem:[%s3 + $0x18] sm:$0xff]
  %v263 = vld [vmem:[%s3 + $0x20] sm:$0xff]
  %v264 = vld [vmem:[%s3 + $0x28] sm:$0xff]
  %v265 = vld [vmem:[%s3 + $0x30] sm:$0xff]
  %v266 = vld [vmem:[%s3 + $0x38] sm:$0xff]
  %v267 = vld [vmem:[%s3 + $0x40] sm:$0xff]
  %v268 = vld [vmem:[%s3 + $0x48] sm:$0xff]
  %v269 = vld [vmem:[%s3 + $0x50] sm:$0xff]
  %v270 = vld [vmem:[%s3 + $0x58] sm:$0xff]
  %v271 = vld [vmem:[%s3 + $0x60] sm:$0xff]
  %v272 = vld [vmem:[%s3 + $0x68] sm:$0xff]
  %v273 = vld [vmem:[%s3 + $0x70] sm:$0xff]
  %v274 = vld [vmem:[%s3 + $0x78] sm:$0xff]
  %v275 = vld [vmem:[%s5 + $0x1] sm:$0x1]
  %v276 = vlaneseq
  %v277 = vshrl.u32 %v276, 7
  %v278 = vsub.s32 0, %v277
  %v279 = vrot.slane %v275, %v278
  %280 = vmatprep.subr.mxu0 0.0
  %281 = vmatpush1.msra.mxu0 %v259
  %282 = vmatprep.subr.mxu0 0.0
  %283 = vmatpush1.msra.mxu0 %v260
  %284 = vmatprep.subr.mxu0 0.0
  %285 = vmatpush1.msra.mxu0 %v261
  %286 = vmatprep.subr.mxu0 0.0
  %287 = vmatpush1.msra.mxu0 %v262
  %288 = vmatprep.subr.mxu0 0.0
  %289 = vmatpush1.msra.mxu0 %v263
  %290 = vmatprep.subr.mxu0 0.0
  %291 = vmatpush1.msra.mxu0 %v264
  %292 = vmatprep.subr.mxu0 0.0
  %293 = vmatpush1.msra.mxu0 %v265
  %294 = vmatprep.subr.mxu0 0.0
  %295 = vmatpush1.msra.mxu0 %v266
  %296 = vmatprep.subr.mxu0 0.0
  %297 = vmatpush1.msra.mxu0 %v267
  %298 = vmatprep.subr.mxu0 0.0
  %299 = vmatpush1.msra.mxu0 %v268
  %300 = vmatprep.subr.mxu0 0.0
  %301 = vmatpush1.msra.mxu0 %v269
  %302 = vmatprep.subr.mxu0 0.0
  %303 = vmatpush1.msra.mxu0 %v270
  %304 = vmatprep.subr.mxu0 0.0
  %305 = vmatpush1.msra.mxu0 %v271
  %306 = vmatprep.subr.mxu0 0.0
  %307 = vmatpush1.msra.mxu0 %v272
  %308 = vmatprep.subr.mxu0 0.0
  %309 = vmatpush1.msra.mxu0 %v273
  %310 = vmatprep.subr.mxu0 0.0
  %311 = vmatpush1.msra.mxu0 %v274
  %312 = vmatprep.subr.mxu0 0.0
  %313 = vmatpush1.msra.mxu0 0.0
  %314 = vmatprep.subr.mxu0 0.0
  %315 = vmatpush1.msra.mxu0 0.0
  %316 = vmatprep.subr.mxu0 0.0
  %317 = vmatpush1.msra.mxu0 0.0
  %318 = vmatprep.subr.mxu0 0.0
  %319 = vmatpush1.msra.mxu0 0.0
  %320 = vmatprep.subr.mxu0 0.0
  %321 = vmatpush1.msra.mxu0 0.0
  %322 = vmatprep.subr.mxu0 0.0
  %323 = vmatpush1.msra.mxu0 0.0
  %324 = vmatprep.subr.mxu0 0.0
  %325 = vmatpush1.msra.mxu0 0.0
  %326 = vmatprep.subr.mxu0 0.0
  %327 = vmatpush1.msra.mxu0 0.0
  %328 = vmatprep.subr.mxu0 0.0
  %329 = vmatpush1.msra.mxu0 0.0
  %330 = vmatprep.subr.mxu0 0.0
  %331 = vmatpush1.msra.mxu0 0.0
  %332 = vmatprep.subr.mxu0 0.0
  %333 = vmatpush1.msra.mxu0 0.0
  %334 = vmatprep.subr.mxu0 0.0
  %335 = vmatpush1.msra.mxu0 0.0
  %336 = vmatprep.subr.mxu0 0.0
  %337 = vmatpush1.msra.mxu0 0.0
  %338 = vmatprep.subr.mxu0 0.0
  %339 = vmatpush1.msra.mxu0 0.0
  %340 = vmatprep.subr.mxu0 0.0
  %341 = vmatpush1.msra.mxu0 0.0
  %342 = vmatprep.subr.mxu0 0.0
  %343 = vmatpush1.msra.mxu0 0.0
  %344 = vmatprep.mubr.f32.mxu0 0.0
  %345 = vmatmul.mubr.f32.gmra.mrb[0].mxu0 %v243
  %v346 = vpop.f32.mrb[0].mxu0
  %v347 = vadd.f32 %v279, %v346
  %v348 = vpop.f32.mrb[0].mxu0
  %349 = vmatprep.mubr.f32.mxu0 0.0
  %350 = vmatmul.mubr.f32.gmra.mrb[0].mxu0 %v244
  %v351 = vpop.f32.mrb[0].mxu0
  %v352 = vadd.f32 %v279, %v351
  %v353 = vpop.f32.mrb[0].mxu0
  %354 = vmatprep.mubr.f32.mxu0 0.0
  %355 = vmatmul.mubr.f32.gmra.mrb[0].mxu0 %v245
  %v356 = vpop.f32.mrb[0].mxu0
  %v357 = vadd.f32 %v279, %v356
  %v358 = vpop.f32.mrb[0].mxu0
  %359 = vmatprep.mubr.f32.mxu0 0.0
  %360 = vmatmul.mubr.f32.gmra.mrb[0].mxu0 %v246
  %v361 = vpop.f32.mrb[0].mxu0
  %v362 = vadd.f32 %v279, %v361
  %v363 = vpop.f32.mrb[0].mxu0
  %364 = vmatprep.mubr.f32.mxu0 0.0
  %365 = vmatmul.mubr.f32.gmra.mrb[0].mxu0 %v247
  %v366 = vpop.f32.mrb[0].mxu0
  %v367 = vadd.f32 %v279, %v366
  %v368 = vpop.f32.mrb[0].mxu0
  %369 = vmatprep.mubr.f32.mxu0 0.0
  %370 = vmatmul.mubr.f32.gmra.mrb[0].mxu0 %v248
  %v371 = vpop.f32.mrb[0].mxu0
  %v372 = vadd.f32 %v279, %v371
  %v373 = vpop.f32.mrb[0].mxu0
  %374 = vmatprep.mubr.f32.mxu0 0.0
  %375 = vmatmul.mubr.f32.gmra.mrb[0].mxu0 %v249
  %v376 = vpop.f32.mrb[0].mxu0
  %v377 = vadd.f32 %v279, %v376
  %v378 = vpop.f32.mrb[0].mxu0
  %379 = vmatprep.mubr.f32.mxu0 0.0
  %380 = vmatmul.mubr.f32.gmra.mrb[0].mxu0 %v250
  %v381 = vpop.f32.mrb[0].mxu0
  %v382 = vadd.f32 %v279, %v381
  %v383 = vpop.f32.mrb[0].mxu0
  %384 = vmatprep.mubr.f32.mxu0 0.0
  %385 = vmatmul.mubr.f32.gmra.mrb[0].mxu0 %v251
  %v386 = vpop.f32.mrb[0].mxu0
  %v387 = vadd.f32 %v279, %v386
  %v388 = vpop.f32.mrb[0].mxu0
  %389 = vmatprep.mubr.f32.mxu0 0.0
  %390 = vmatmul.mubr.f32.gmra.mrb[0].mxu0 %v252
  %v391 = vpop.f32.mrb[0].mxu0
  %v392 = vadd.f32 %v279, %v391
  %v393 = vpop.f32.mrb[0].mxu0
  %394 = vmatprep.mubr.f32.mxu0 0.0
  %395 = vmatmul.mubr.f32.gmra.mrb[0].mxu0 %v253
  %v396 = vpop.f32.mrb[0].mxu0
  %v397 = vadd.f32 %v279, %v396
  %v398 = vpop.f32.mrb[0].mxu0
  %399 = vmatprep.mubr.f32.mxu0 0.0
  %400 = vmatmul.mubr.f32.gmra.mrb[0].mxu0 %v254
  %v401 = vpop.f32.mrb[0].mxu0
  %v402 = vadd.f32 %v279, %v401
  %v403 = vpop.f32.mrb[0].mxu0
  %404 = vmatprep.mubr.f32.mxu0 0.0
  %405 = vmatmul.mubr.f32.gmra.mrb[0].mxu0 %v255
  %v406 = vpop.f32.mrb[0].mxu0
  %v407 = vadd.f32 %v279, %v406
  %v408 = vpop.f32.mrb[0].mxu0
  %409 = vmatprep.mubr.f32.mxu0 0.0
  %410 = vmatmul.mubr.f32.gmra.mrb[0].mxu0 %v256
  %v411 = vpop.f32.mrb[0].mxu0
  %v412 = vadd.f32 %v279, %v411
  %v413 = vpop.f32.mrb[0].mxu0
  %414 = vmatprep.mubr.f32.mxu0 0.0
  %415 = vmatmul.mubr.f32.gmra.mrb[0].mxu0 %v257
  %v416 = vpop.f32.mrb[0].mxu0
  %v417 = vadd.f32 %v279, %v416
  %v418 = vpop.f32.mrb[0].mxu0
  %419 = vmatprep.mubr.f32.mxu0 0.0
  %420 = vmatmul.mubr.f32.gmra.mrb[0].mxu0 %v258
  %v421 = vpop.f32.mrb[0].mxu0
  %v422 = vadd.f32 %v279, %v421
  %v423 = vpop.f32.mrb[0].mxu0
  %424 = vdwg.mxu0
  %v425 = vmax.f32 %v347, 0.0
  %v426 = vmax.f32 %v352, 0.0
  %v427 = vmax.f32 %v357, 0.0
  %v428 = vmax.f32 %v362, 0.0
  %v429 = vmax.f32 %v367, 0.0
  %v430 = vmax.f32 %v372, 0.0
  %v431 = vmax.f32 %v377, 0.0
  %v432 = vmax.f32 %v382, 0.0
  %v433 = vmax.f32 %v387, 0.0
  %v434 = vmax.f32 %v392, 0.0
  %v435 = vmax.f32 %v397, 0.0
  %v436 = vmax.f32 %v402, 0.0
  %v437 = vmax.f32 %v407, 0.0
  %v438 = vmax.f32 %v412, 0.0
  %v439 = vmax.f32 %v417, 0.0
  %v440 = vmax.f32 %v422, 0.0
  %v441 = vld [vmem:[%s4] sm:$0xff]
  %v442 = vld [vmem:[%s4 + $0x8] sm:$0xff]
  %v443 = vld [vmem:[%s4 + $0x10] sm:$0xff]
  %v444 = vld [vmem:[%s4 + $0x18] sm:$0xff]
  %v445 = vld [vmem:[%s4 + $0x20] sm:$0xff]
  %v446 = vld [vmem:[%s4 + $0x28] sm:$0xff]
  %v447 = vld [vmem:[%s4 + $0x30] sm:$0xff]
  %v448 = vld [vmem:[%s4 + $0x38] sm:$0xff]
  %v449 = vld [vmem:[%s4 + $0x40] sm:$0xff]
  %v450 = vld [vmem:[%s4 + $0x48] sm:$0xff]
  %v451 = vld [vmem:[%s4 + $0x50] sm:$0xff]
  %v452 = vld [vmem:[%s4 + $0x58] sm:$0xff]
  %v453 = vld [vmem:[%s4 + $0x60] sm:$0xff]
  %v454 = vld [vmem:[%s4 + $0x68] sm:$0xff]
  %v455 = vld [vmem:[%s4 + $0x70] sm:$0xff]
  %v456 = vld [vmem:[%s4 + $0x78] sm:$0xff]
  %v457 = vld [vmem:[%s5 + $0x2] sm:$0x1]
  %v458 = vlaneseq
  %v459 = vshrl.u32 %v458, 7
  %v460 = vsub.s32 0, %v459
  %v461 = vrot.slane %v457, %v460
  %462 = vmatprep.subr.mxu0 0.0
  %463 = vmatpush1.msra.mxu0 %v441
  %464 = vmatprep.subr.mxu0 0.0
  %465 = vmatpush1.msra.mxu0 %v442
  %466 = vmatprep.subr.mxu0 0.0
  %467 = vmatpush1.msra.mxu0 %v443
  %468 = vmatprep.subr.mxu0 0.0
  %469 = vmatpush1.msra.mxu0 %v444
  %470 = vmatprep.subr.mxu0 0.0
  %471 = vmatpush1.msra.mxu0 %v445
  %472 = vmatprep.subr.mxu0 0.0
  %473 = vmatpush1.msra.mxu0 %v446
  %474 = vmatprep.subr.mxu0 0.0
  %475 = vmatpush1.msra.mxu0 %v447
  %476 = vmatprep.subr.mxu0 0.0
  %477 = vmatpush1.msra.mxu0 %v448
  %478 = vmatprep.subr.mxu0 0.0
  %479 = vmatpush1.msra.mxu0 %v449
  %480 = vmatprep.subr.mxu0 0.0
  %481 = vmatpush1.msra.mxu0 %v450
  %482 = vmatprep.subr.mxu0 0.0
  %483 = vmatpush1.msra.mxu0 %v451
  %484 = vmatprep.subr.mxu0 0.0
  %485 = vmatpush1.msra.mxu0 %v452
  %486 = vmatprep.subr.mxu0 0.0
  %487 = vmatpush1.msra.mxu0 %v453
  %488 = vmatprep.subr.mxu0 0.0
  %489 = vmatpush1.msra.mxu0 %v454
  %490 = vmatprep.subr.mxu0 0.0
  %491 = vmatpush1.msra.mxu0 %v455
  %492 = vmatprep.subr.mxu0 0.0
  %493 = vmatpush1.msra.mxu0 %v456
  %494 = vmatprep.subr.mxu0 0.0
  %495 = vmatpush1.msra.mxu0 0.0
  %496 = vmatprep.subr.mxu0 0.0
  %497 = vmatpush1.msra.mxu0 0.0
  %498 = vmatprep.subr.mxu0 0.0
  %499 = vmatpush1.msra.mxu0 0.0
  %500 = vmatprep.subr.mxu0 0.0
  %501 = vmatpush1.msra.mxu0 0.0
  %502 = vmatprep.subr.mxu0 0.0
  %503 = vmatpush1.msra.mxu0 0.0
  %504 = vmatprep.subr.mxu0 0.0
  %505 = vmatpush1.msra.mxu0 0.0
  %506 = vmatprep.subr.mxu0 0.0
  %507 = vmatpush1.msra.mxu0 0.0
  %508 = vmatprep.subr.mxu0 0.0
  %509 = vmatpush1.msra.mxu0 0.0
  %510 = vmatprep.subr.mxu0 0.0
  %511 = vmatpush1.msra.mxu0 0.0
  %512 = vmatprep.subr.mxu0 0.0
  %513 = vmatpush1.msra.mxu0 0.0
  %514 = vmatprep.subr.mxu0 0.0
  %515 = vmatpush1.msra.mxu0 0.0
  %516 = vmatprep.subr.mxu0 0.0
  %517 = vmatpush1.msra.mxu0 0.0
  %518 = vmatprep.subr.mxu0 0.0
  %519 = vmatpush1.msra.mxu0 0.0
  %520 = vmatprep.subr.mxu0 0.0
  %521 = vmatpush1.msra.mxu0 0.0
  %522 = vmatprep.subr.mxu0 0.0
  %523 = vmatpush1.msra.mxu0 0.0
  %524 = vmatprep.subr.mxu0 0.0
  %525 = vmatpush1.msra.mxu0 0.0
  %526 = vmatprep.mubr.f32.mxu0 0.0
  %527 = vmatmul.mubr.f32.gmra.mrb[0].mxu0 %v425
  %v528 = vpop.f32.mrb[0].mxu0
  %v529 = vadd.f32 %v461, %v528
  %v530 = vpop.f32.mrb[0].mxu0
  %531 = vmatprep.mubr.f32.mxu0 0.0
  %532 = vmatmul.mubr.f32.gmra.mrb[0].mxu0 %v426
  %v533 = vpop.f32.mrb[0].mxu0
  %v534 = vadd.f32 %v461, %v533
  %v535 = vpop.f32.mrb[0].mxu0
  %536 = vmatprep.mubr.f32.mxu0 0.0
  %537 = vmatmul.mubr.f32.gmra.mrb[0].mxu0 %v427
  %v538 = vpop.f32.mrb[0].mxu0
  %v539 = vadd.f32 %v461, %v538
  %v540 = vpop.f32.mrb[0].mxu0
  %541 = vmatprep.mubr.f32.mxu0 0.0
  %542 = vmatmul.mubr.f32.gmra.mrb[0].mxu0 %v428
  %v543 = vpop.f32.mrb[0].mxu0
  %v544 = vadd.f32 %v461, %v543
  %v545 = vpop.f32.mrb[0].mxu0
  %546 = vmatprep.mubr.f32.mxu0 0.0
  %547 = vmatmul.mubr.f32.gmra.mrb[0].mxu0 %v429
  %v548 = vpop.f32.mrb[0].mxu0
  %v549 = vadd.f32 %v461, %v548
  %v550 = vpop.f32.mrb[0].mxu0
  %551 = vmatprep.mubr.f32.mxu0 0.0
  %552 = vmatmul.mubr.f32.gmra.mrb[0].mxu0 %v430
  %v553 = vpop.f32.mrb[0].mxu0
  %v554 = vadd.f32 %v461, %v553
  %v555 = vpop.f32.mrb[0].mxu0
  %556 = vmatprep.mubr.f32.mxu0 0.0
  %557 = vmatmul.mubr.f32.gmra.mrb[0].mxu0 %v431
  %v558 = vpop.f32.mrb[0].mxu0
  %v559 = vadd.f32 %v461, %v558
  %v560 = vpop.f32.mrb[0].mxu0
  %561 = vmatprep.mubr.f32.mxu0 0.0
  %562 = vmatmul.mubr.f32.gmra.mrb[0].mxu0 %v432
  %v563 = vpop.f32.mrb[0].mxu0
  %v564 = vadd.f32 %v461, %v563
  %v565 = vpop.f32.mrb[0].mxu0
  %566 = vmatprep.mubr.f32.mxu0 0.0
  %567 = vmatmul.mubr.f32.gmra.mrb[0].mxu0 %v433
  %v568 = vpop.f32.mrb[0].mxu0
  %v569 = vadd.f32 %v461, %v568
  %v570 = vpop.f32.mrb[0].mxu0
  %571 = vmatprep.mubr.f32.mxu0 0.0
  %572 = vmatmul.mubr.f32.gmra.mrb[0].mxu0 %v434
  %v573 = vpop.f32.mrb[0].mxu0
  %v574 = vadd.f32 %v461, %v573
  %v575 = vpop.f32.mrb[0].mxu0
  %576 = vmatprep.mubr.f32.mxu0 0.0
  %577 = vmatmul.mubr.f32.gmra.mrb[0].mxu0 %v435
  %v578 = vpop.f32.mrb[0].mxu0
  %v579 = vadd.f32 %v461, %v578
  %v580 = vpop.f32.mrb[0].mxu0
  %581 = vmatprep.mubr.f32.mxu0 0.0
  %582 = vmatmul.mubr.f32.gmra.mrb[0].mxu0 %v436
  %v583 = vpop.f32.mrb[0].mxu0
  %v584 = vadd.f32 %v461, %v583
  %v585 = vpop.f32.mrb[0].mxu0
  %586 = vmatprep.mubr.f32.mxu0 0.0
  %587 = vmatmul.mubr.f32.gmra.mrb[0].mxu0 %v437
  %v588 = vpop.f32.mrb[0].mxu0
  %v589 = vadd.f32 %v461, %v588
  %v590 = vpop.f32.mrb[0].mxu0
  %591 = vmatprep.mubr.f32.mxu0 0.0
  %592 = vmatmul.mubr.f32.gmra.mrb[0].mxu0 %v438
  %v593 = vpop.f32.mrb[0].mxu0
  %v594 = vadd.f32 %v461, %v593
  %v595 = vpop.f32.mrb[0].mxu0
  %596 = vmatprep.mubr.f32.mxu0 0.0
  %597 = vmatmul.mubr.f32.gmra.mrb[0].mxu0 %v439
  %v598 = vpop.f32.mrb[0].mxu0
  %v599 = vadd.f32 %v461, %v598
  %v600 = vpop.f32.mrb[0].mxu0
  %601 = vmatprep.mubr.f32.mxu0 0.0
  %602 = vmatmul.mubr.f32.gmra.mrb[0].mxu0 %v440
  %v603 = vpop.f32.mrb[0].mxu0
  %v604 = vadd.f32 %v461, %v603
  %v605 = vpop.f32.mrb[0].mxu0
  %606 = vdwg.mxu0
  %v607 = vld [vmem:[%s6] sm:$0x1]
  %v608 = vld [vmem:[%s1] sm:$0xff]
  %v609 = vld [vmem:[%s1 + $0x8] sm:$0xff]
  %v610 = vld [vmem:[%s1 + $0x10] sm:$0xff]
  %v611 = vld [vmem:[%s1 + $0x18] sm:$0xff]
  %v612 = vld [vmem:[%s1 + $0x20] sm:$0xff]
  %v613 = vld [vmem:[%s1 + $0x28] sm:$0xff]
  %v614 = vld [vmem:[%s1 + $0x30] sm:$0xff]
  %v615 = vld [vmem:[%s1 + $0x38] sm:$0xff]
  %v616 = vld [vmem:[%s1 + $0x40] sm:$0xff]
  %v617 = vld [vmem:[%s1 + $0x48] sm:$0xff]
  %v618 = vld [vmem:[%s1 + $0x50] sm:$0xff]
  %v619 = vld [vmem:[%s1 + $0x58] sm:$0xff]
  %v620 = vld [vmem:[%s1 + $0x60] sm:$0xff]
  %v621 = vld [vmem:[%s1 + $0x68] sm:$0xff]
  %v622 = vld [vmem:[%s1 + $0x70] sm:$0xff]
  %v623 = vld [vmem:[%s1 + $0x78] sm:$0xff]
  %v625 = vlaneseq
  %v626 = vshrl.u32 %v625, 7
  %v627 = vsub.s32 0, %v626
  %v628 = vrot.slane %v607, %v627
  %v630 = vmul.f32 %v628, %v608
  %v631 = vmul.f32 %v628, %v609
  %v632 = vmul.f32 %v628, %v610
  %v633 = vmul.f32 %v628, %v611
  %v634 = vmul.f32 %v628, %v612
  %v635 = vmul.f32 %v628, %v613
  %v636 = vmul.f32 %v628, %v614
  %v637 = vmul.f32 %v628, %v615
  %v638 = vmul.f32 %v628, %v616
  %v639 = vmul.f32 %v628, %v617
  %v640 = vmul.f32 %v628, %v618
  %v641 = vmul.f32 %v628, %v619
  %v642 = vmul.f32 %v628, %v620
  %v643 = vmul.f32 %v628, %v621
  %v644 = vmul.f32 %v628, %v622
  %v645 = vmul.f32 %v628, %v623
  %v646 = vadd.f32 %v529, %v630
  %v647 = vadd.f32 %v534, %v631
  %v648 = vadd.f32 %v539, %v632
  %v649 = vadd.f32 %v544, %v633
  %v650 = vadd.f32 %v549, %v634
  %v651 = vadd.f32 %v554, %v635
  %v652 = vadd.f32 %v559, %v636
  %v653 = vadd.f32 %v564, %v637
  %v654 = vadd.f32 %v569, %v638
  %v655 = vadd.f32 %v574, %v639
  %v656 = vadd.f32 %v579, %v640
  %v657 = vadd.f32 %v584, %v641
  %v658 = vadd.f32 %v589, %v642
  %v659 = vadd.f32 %v594, %v643
  %v660 = vadd.f32 %v599, %v644
  %v661 = vadd.f32 %v604, %v645
  %662 = vst [vmem:[%s7] sm:$0xff] %v646
  %663 = vst [vmem:[%s7 + $0x8] sm:$0xff] %v647
  %664 = vst [vmem:[%s7 + $0x10] sm:$0xff] %v648
  %665 = vst [vmem:[%s7 + $0x18] sm:$0xff] %v649
  %666 = vst [vmem:[%s7 + $0x20] sm:$0xff] %v650
  %667 = vst [vmem:[%s7 + $0x28] sm:$0xff] %v651
  %668 = vst [vmem:[%s7 + $0x30] sm:$0xff] %v652
  %669 = vst [vmem:[%s7 + $0x38] sm:$0xff] %v653
  %670 = vst [vmem:[%s7 + $0x40] sm:$0xff] %v654
  %671 = vst [vmem:[%s7 + $0x48] sm:$0xff] %v655
  %672 = vst [vmem:[%s7 + $0x50] sm:$0xff] %v656
  %673 = vst [vmem:[%s7 + $0x58] sm:$0xff] %v657
  %674 = vst [vmem:[%s7 + $0x60] sm:$0xff] %v658
  %675 = vst [vmem:[%s7 + $0x68] sm:$0xff] %v659
  %676 = vst [vmem:[%s7 + $0x70] sm:$0xff] %v660
  %677 = vst [vmem:[%s7 + $0x78] sm:$0xff] %v661
  // Predicated region
  $region30: #{mlp_gaussian_forward.1} parent=0 // pred_check
    _
  $region31: #{mlp_gaussian_forward.1} parent=0 // pred_check_branch
    %679 = sbr.rel (0) target = $region33
  $region32: #{mlp_gaussian_forward.1} parent=0 // pred_region
    _
  $region33: #{mlp_gaussian_forward.1} parent=0 // pred_fallthru
    _
  // Predicated region
  $region34: #{mlp_gaussian_forward.1} parent=0 // pred_check
    _
  $region35: #{mlp_gaussian_forward.1} parent=0 // pred_check_branch
    %681 = sbr.rel (0) target = $region37
  $region36: #{mlp_gaussian_forward.1} parent=0 // pred_region
    _
  $region37: #{mlp_gaussian_forward.1} parent=0 // pred_fallthru
    _

</llo_original>
